<compile_context>
chip_gen: v6e
topology: v6e:2x2x1
jax: 0.10.0
libtpu: 0.0.40
codegen_flags: <defaults>
</compile_context>

<pallas_src>
import functools

import jax
import jax.numpy as jnp
from jax.experimental import pallas as pl
from jax.experimental.pallas import tpu as pltpu


_UNROLL_INPUT_MAX_K = 8  # unroll first layer on the VPU when state_size <= this


def _make_critic_kernel(n_hidden, unroll_input, matmul_dtype):
    """Kernel: relu(x@Win+bin) -> n_hidden x relu(.@Wi+bi) -> sum(.*wout)+bout."""

    def kernel(*refs):
        x_ref = refs[0]
        w_in_ref, b_in_ref = refs[1], refs[2]
        hidden_refs = refs[3:3 + 2 * n_hidden]
        w_out_ref, b_out_ref = refs[3 + 2 * n_hidden], refs[4 + 2 * n_hidden]
        out_ref = refs[5 + 2 * n_hidden]

        x = x_ref[...]
        tile = x.shape[0]
        hidden = w_in_ref.shape[1]

        if unroll_input:
            # K is tiny: a (T,K)x(K,H) matmul would use only K of 128/256 MXU
            # rows and still pay the full result-FIFO drain.  Do K broadcast
            # FMAs on the VPU instead (all f32).
            h = jnp.broadcast_to(b_in_ref[...], (tile, hidden))
            for k in range(x.shape[1]):
                h = h + x[:, k:k + 1] * w_in_ref[k:k + 1, :]
            h = jnp.maximum(h, 0.0)
        else:
            h = jnp.dot(x.astype(matmul_dtype), w_in_ref[...],
                        preferred_element_type=jnp.float32)
            h = jnp.maximum(h + b_in_ref[...], 0.0)

        # Hidden layers: MXU matmuls (bf16 or f32 inputs), f32 accumulation,
        # f32 bias + ReLU on the VPU.
        for i in range(n_hidden):
            w_ref = hidden_refs[2 * i]
            b_ref = hidden_refs[2 * i + 1]
            h = jnp.dot(h.astype(matmul_dtype), w_ref[...],
                        preferred_element_type=jnp.float32)
            h = jnp.maximum(h + b_ref[...], 0.0)

        # Value head (out_features == 1): VPU multiply + XLU lane reduction
        # instead of a degenerate (T,H)x(H,1) MXU matmul.
        v = jnp.sum(h * w_out_ref[...], axis=-1, keepdims=True) + b_out_ref[...]
        out_ref[...] = v.astype(out_ref.dtype)

    return kernel


@functools.partial(jax.jit, static_argnames=("batch_tile", "matmul_dtype"))
def critic_forward(state, params, batch_tile=512, matmul_dtype=jnp.float32):
    """state: (B, state_size) f32 -> (B, 1) f32.

    params: [(w_in, b_in), (w0, b0), ..., (w_out, b_out)], weights stored
    (in, out), biases stored (1, out).
    """
    matmul_dtype = jnp.dtype(matmul_dtype)
    (w_in, b_in), *hidden, (w_out, b_out) = params
    n_hidden = len(hidden)
    B, S = state.shape
    H = w_in.shape[1]

    unroll_input = S <= _UNROLL_INPUT_MAX_K

    # Reduced-precision inputs feed only the MXU; cast the matmul weights in the
    # wrapper so the kernel DMAs half the weight bytes.  Biases (and the VPU
    # head / unrolled first layer) stay f32.
    if matmul_dtype != jnp.dtype(jnp.float32):
        if not unroll_input:
            w_in = w_in.astype(matmul_dtype)
        hidden = [(w.astype(matmul_dtype), b) for (w, b) in hidden]

    # Head weight as a (1, H) row for the VPU multiply + lane reduce.
    w_out_row = w_out.reshape(1, H).astype(jnp.float32)

    # Batch tile: large enough to amortize per-grid-step overhead, clamped and
    # rounded so BlockSpec shapes stay legal ((8,128) rule: multiple of 8, or
    # equal to the full batch dim).
    batch_tile = min(batch_tile, B)
    if batch_tile < B:
        batch_tile = max(8, (batch_tile // 8) * 8)
    num_tiles = pl.cdiv(B, batch_tile)

    full = lambda a: pl.BlockSpec(a.shape, lambda i: (0,) * a.ndim)

    flat_params = [w_in, b_in]
    for w, b in hidden:
        flat_params += [w, b]
    flat_params += [w_out_row, b_out]

    flops = 2 * B * (S * H + n_hidden * H * H + H)
    bytes_accessed = state.size * state.dtype.itemsize + B * 4
    for p in flat_params:
        bytes_accessed += p.size * p.dtype.itemsize

    kernel = _make_critic_kernel(n_hidden, unroll_input, matmul_dtype)

    return pl.pallas_call(
        kernel,
        out_shape=jax.ShapeDtypeStruct((B, 1), jnp.float32),
        grid_spec=pltpu.PrefetchScalarGridSpec(
            num_scalar_prefetch=0,
            grid=(num_tiles,),
            in_specs=[pl.BlockSpec((batch_tile, S), lambda i: (i, 0))]
                     + [full(p) for p in flat_params],
            out_specs=pl.BlockSpec((batch_tile, 1), lambda i: (i, 0)),
        ),
        compiler_params=pltpu.CompilerParams(
            dimension_semantics=("parallel",)),
        cost_estimate=pl.CostEstimate(
            flops=flops, transcendentals=0, bytes_accessed=bytes_accessed),
    )(state, *flat_params)


def init_params(key, state_size, hidden_size, n_hidden=2):
    """Deterministic init mimicking nn.Linear's U(-1/sqrt(fan_in), 1/sqrt(fan_in)).

    Weights stored (in, out) so the kernel does x @ W + b; biases stored (1, out).
    """
    def linear(key, fan_in, fan_out):
        kw, kb = jax.random.split(key)
        bound = 1.0 / jnp.sqrt(jnp.float32(fan_in))
        w = jax.random.uniform(kw, (fan_in, fan_out), jnp.float32, -bound, bound)
        b = jax.random.uniform(kb, (1, fan_out), jnp.float32, -bound, bound)
        return w, b

    keys = jax.random.split(key, n_hidden + 2)
    layers = [linear(keys[0], state_size, hidden_size)]
    for i in range(n_hidden):
        layers.append(linear(keys[1 + i], hidden_size, hidden_size))
    layers.append(linear(keys[-1], hidden_size, 1))
    return layers


def critic_reference(state, params):
    (w_in, b_in), *hidden, (w_out, b_out) = params
    h = jax.nn.relu(state @ w_in + b_in)
    for w, b in hidden:
        h = jax.nn.relu(h @ w + b)
    return h @ w_out + b_out


if __name__ == "__main__":
    key = jax.random.PRNGKey(0)

    # --- small test: module-like shapes, single tile, unrolled (VPU) first layer ---
    batch, state_size, hidden_size = 8, 4, 32
    k_params, k_state, key = jax.random.split(key, 3)
    params = init_params(k_params, state_size, hidden_size, n_hidden=2)
    state = jax.random.normal(k_state, (batch, state_size), jnp.float32)

    value = jax.block_until_ready(critic_forward(state, params))
    ref = critic_reference(state, params)
    assert value.shape == (batch, 1), value.shape
    assert jnp.allclose(value, ref, atol=1e-5, rtol=1e-5), (value, ref)

    # --- larger multi-tile test: 4 grid steps ("parallel" -> both v7x TCs), MXU first layer ---
    batch2, state_size2, hidden_size2 = 1024, 64, 256
    k_params2, k_state2, key = jax.random.split(key, 3)
    params2 = init_params(k_params2, state_size2, hidden_size2, n_hidden=2)
    state2 = jax.random.normal(k_state2, (batch2, state_size2), jnp.float32)

    value2 = jax.block_until_ready(critic_forward(state2, params2, batch_tile=256))
    ref2 = critic_reference(state2, params2)
    assert value2.shape == (batch2, 1), value2.shape
    assert jnp.allclose(value2, ref2, atol=5e-3, rtol=5e-3), (value2, ref2)

    # --- bf16 matmul-input path (v6e/v7x MXU fast path), f32 accumulation ---
    value3 = jax.block_until_ready(
        critic_forward(state2, params2, batch_tile=256, matmul_dtype=jnp.bfloat16))
    assert value3.shape == (batch2, 1), value3.shape
    assert jnp.allclose(value3, ref2, atol=5e-2, rtol=5e-2), (value3, ref2)

    print("KERNEL_OK")
</pallas_src>

<mosaic_0001>
module attributes {stable_mosaic.version = 11 : i64} {
  func.func @kernel(%arg0: i32, %arg1: memref<8x4xf32, #tpu.memory_space<vmem>>, %arg2: memref<4x32xf32, #tpu.memory_space<vmem>>, %arg3: memref<1x32xf32, #tpu.memory_space<vmem>>, %arg4: memref<32x32xf32, #tpu.memory_space<vmem>>, %arg5: memref<1x32xf32, #tpu.memory_space<vmem>>, %arg6: memref<32x32xf32, #tpu.memory_space<vmem>>, %arg7: memref<1x32xf32, #tpu.memory_space<vmem>>, %arg8: memref<1x32xf32, #tpu.memory_space<vmem>>, %arg9: memref<1x1xf32, #tpu.memory_space<vmem>>, %arg10: memref<8x1xf32, #tpu.memory_space<vmem>>) attributes {dimension_semantics = [#tpu.dimension_semantics<parallel>], iteration_bounds = array<i64: 1>, scalar_prefetch = 0 : i64, scratch_operands = 0 : i64, tpu.core_type = #tpu.core_type<tc>, window_params = [{transform_indices = @transform_0, window_bounds = array<i64: 8, 4>}, {pipeline_mode = #tpu.pipeline_mode<synchronous>, transform_indices = @transform_1, window_bounds = array<i64: 4, 32>}, {pipeline_mode = #tpu.pipeline_mode<synchronous>, transform_indices = @transform_2, window_bounds = array<i64: 1, 32>}, {pipeline_mode = #tpu.pipeline_mode<synchronous>, transform_indices = @transform_3, window_bounds = array<i64: 32, 32>}, {pipeline_mode = #tpu.pipeline_mode<synchronous>, transform_indices = @transform_4, window_bounds = array<i64: 1, 32>}, {pipeline_mode = #tpu.pipeline_mode<synchronous>, transform_indices = @transform_5, window_bounds = array<i64: 32, 32>}, {pipeline_mode = #tpu.pipeline_mode<synchronous>, transform_indices = @transform_6, window_bounds = array<i64: 1, 32>}, {pipeline_mode = #tpu.pipeline_mode<synchronous>, transform_indices = @transform_7, window_bounds = array<i64: 1, 32>}, {pipeline_mode = #tpu.pipeline_mode<synchronous>, transform_indices = @transform_8, window_bounds = array<i64: 1, 1>}, {transform_indices = @transform_9, window_bounds = array<i64: 8, 1>}]} {
    %c0 = arith.constant 0 : index
    %c0_0 = arith.constant 0 : index
    %0 = vector.load %arg1[%c0, %c0_0] : memref<8x4xf32, #tpu.memory_space<vmem>>, vector<8x4xf32>
    %c0_1 = arith.constant 0 : index
    %c0_2 = arith.constant 0 : index
    %1 = vector.load %arg3[%c0_1, %c0_2] : memref<1x32xf32, #tpu.memory_space<vmem>>, vector<1x32xf32>
    %2 = vector.shape_cast %1 : vector<1x32xf32> to vector<1x32xf32>
    %3 = vector.broadcast %2 : vector<1x32xf32> to vector<8x32xf32>
    %4 = vector.extract_strided_slice %0 {offsets = [0, 0], sizes = [8, 1], strides = [1, 1]} : vector<8x4xf32> to vector<8x1xf32>
    %c0_3 = arith.constant 0 : index
    %c0_4 = arith.constant 0 : index
    %5 = vector.load %arg2[%c0_3, %c0_4] : memref<4x32xf32, #tpu.memory_space<vmem>>, vector<1x32xf32>
    %6 = vector.broadcast %4 : vector<8x1xf32> to vector<8x32xf32>
    %7 = vector.broadcast %5 : vector<1x32xf32> to vector<8x32xf32>
    %8 = arith.mulf %6, %7 : vector<8x32xf32>
    %9 = arith.addf %3, %8 : vector<8x32xf32>
    %10 = vector.extract_strided_slice %0 {offsets = [0, 1], sizes = [8, 1], strides = [1, 1]} : vector<8x4xf32> to vector<8x1xf32>
    %c1 = arith.constant 1 : index
    %c0_5 = arith.constant 0 : index
    %11 = vector.load %arg2[%c1, %c0_5] : memref<4x32xf32, #tpu.memory_space<vmem>>, vector<1x32xf32>
    %12 = vector.broadcast %10 : vector<8x1xf32> to vector<8x32xf32>
    %13 = vector.broadcast %11 : vector<1x32xf32> to vector<8x32xf32>
    %14 = arith.mulf %12, %13 : vector<8x32xf32>
    %15 = arith.addf %9, %14 : vector<8x32xf32>
    %16 = vector.extract_strided_slice %0 {offsets = [0, 2], sizes = [8, 1], strides = [1, 1]} : vector<8x4xf32> to vector<8x1xf32>
    %c2 = arith.constant 2 : index
    %c0_6 = arith.constant 0 : index
    %17 = vector.load %arg2[%c2, %c0_6] : memref<4x32xf32, #tpu.memory_space<vmem>>, vector<1x32xf32>
    %18 = vector.broadcast %16 : vector<8x1xf32> to vector<8x32xf32>
    %19 = vector.broadcast %17 : vector<1x32xf32> to vector<8x32xf32>
    %20 = arith.mulf %18, %19 : vector<8x32xf32>
    %21 = arith.addf %15, %20 : vector<8x32xf32>
    %22 = vector.extract_strided_slice %0 {offsets = [0, 3], sizes = [8, 1], strides = [1, 1]} : vector<8x4xf32> to vector<8x1xf32>
    %c3 = arith.constant 3 : index
    %c0_7 = arith.constant 0 : index
    %23 = vector.load %arg2[%c3, %c0_7] : memref<4x32xf32, #tpu.memory_space<vmem>>, vector<1x32xf32>
    %24 = vector.broadcast %22 : vector<8x1xf32> to vector<8x32xf32>
    %25 = vector.broadcast %23 : vector<1x32xf32> to vector<8x32xf32>
    %26 = arith.mulf %24, %25 : vector<8x32xf32>
    %27 = arith.addf %21, %26 : vector<8x32xf32>
    %cst = arith.constant 0.000000e+00 : f32
    %28 = vector.broadcast %cst : f32 to vector<8x32xf32>
    %29 = arith.maximumf %27, %28 : vector<8x32xf32>
    %c0_8 = arith.constant 0 : index
    %c0_9 = arith.constant 0 : index
    %30 = vector.load %arg4[%c0_8, %c0_9] : memref<32x32xf32, #tpu.memory_space<vmem>>, vector<32x32xf32>
    %cst_10 = arith.constant dense<0.000000e+00> : vector<8x32xf32>
    %31 = tpu.matmul %29, %30, %cst_10 {dimension_numbers = #tpu.dot_dimension_numbers<[1], [0], [0], [1], [0, 0, 1, 1], [], []>} : vector<8x32xf32>, vector<32x32xf32>, vector<8x32xf32> -> vector<8x32xf32>
    %c0_11 = arith.constant 0 : index
    %c0_12 = arith.constant 0 : index
    %32 = vector.load %arg5[%c0_11, %c0_12] : memref<1x32xf32, #tpu.memory_space<vmem>>, vector<1x32xf32>
    %33 = vector.broadcast %32 : vector<1x32xf32> to vector<8x32xf32>
    %34 = arith.addf %31, %33 : vector<8x32xf32>
    %cst_13 = arith.constant 0.000000e+00 : f32
    %35 = vector.broadcast %cst_13 : f32 to vector<8x32xf32>
    %36 = arith.maximumf %34, %35 : vector<8x32xf32>
    %c0_14 = arith.constant 0 : index
    %c0_15 = arith.constant 0 : index
    %37 = vector.load %arg6[%c0_14, %c0_15] : memref<32x32xf32, #tpu.memory_space<vmem>>, vector<32x32xf32>
    %cst_16 = arith.constant dense<0.000000e+00> : vector<8x32xf32>
    %38 = tpu.matmul %36, %37, %cst_16 {dimension_numbers = #tpu.dot_dimension_numbers<[1], [0], [0], [1], [0, 0, 1, 1], [], []>} : vector<8x32xf32>, vector<32x32xf32>, vector<8x32xf32> -> vector<8x32xf32>
    %c0_17 = arith.constant 0 : index
    %c0_18 = arith.constant 0 : index
    %39 = vector.load %arg7[%c0_17, %c0_18] : memref<1x32xf32, #tpu.memory_space<vmem>>, vector<1x32xf32>
    %40 = vector.broadcast %39 : vector<1x32xf32> to vector<8x32xf32>
    %41 = arith.addf %38, %40 : vector<8x32xf32>
    %cst_19 = arith.constant 0.000000e+00 : f32
    %42 = vector.broadcast %cst_19 : f32 to vector<8x32xf32>
    %43 = arith.maximumf %41, %42 : vector<8x32xf32>
    %c0_20 = arith.constant 0 : index
    %c0_21 = arith.constant 0 : index
    %44 = vector.load %arg8[%c0_20, %c0_21] : memref<1x32xf32, #tpu.memory_space<vmem>>, vector<1x32xf32>
    %45 = vector.broadcast %44 : vector<1x32xf32> to vector<8x32xf32>
    %46 = arith.mulf %43, %45 : vector<8x32xf32>
    %cst_22 = arith.constant dense<0.000000e+00> : vector<8xf32>
    %47 = vector.multi_reduction <add>, %46, %cst_22 [1] : vector<8x32xf32> to vector<8xf32>
    %48 = vector.shape_cast %47 : vector<8xf32> to vector<8x1xf32>
    %c0_23 = arith.constant 0 : index
    %c0_24 = arith.constant 0 : index
    %49 = vector.load %arg9[%c0_23, %c0_24] : memref<1x1xf32, #tpu.memory_space<vmem>>, vector<1x1xf32>
    %50 = vector.broadcast %49 : vector<1x1xf32> to vector<8x1xf32>
    %51 = arith.addf %48, %50 : vector<8x1xf32>
    %c0_25 = arith.constant 0 : index
    %c0_26 = arith.constant 0 : index
    %52 = vector.load %arg10[%c0_25, %c0_26] : memref<8x1xf32, #tpu.memory_space<vmem>>, vector<8x1xf32>
    tpu.vector_store %arg10[%c0_25, %c0_26], %51 {strides = array<i32>} : memref<8x1xf32, #tpu.memory_space<vmem>>, vector<8x1xf32>,
    return
  }
  func.func @transform_0(%arg0: i32) -> (i32, i32) {
    %c0_i32 = arith.constant 0 : i32
    %c0_i32_0 = arith.constant 0 : i32
    return %arg0, %c0_i32 : i32, i32
  }
  func.func @transform_1(%arg0: i32) -> (i32, i32) {
    %c0_i32 = arith.constant 0 : i32
    %c0_i32_0 = arith.constant 0 : i32
    %c0_i32_1 = arith.constant 0 : i32
    return %c0_i32, %c0_i32_0 : i32, i32
  }
  func.func @transform_2(%arg0: i32) -> (i32, i32) {
    %c0_i32 = arith.constant 0 : i32
    %c0_i32_0 = arith.constant 0 : i32
    %c0_i32_1 = arith.constant 0 : i32
    return %c0_i32, %c0_i32_0 : i32, i32
  }
  func.func @transform_3(%arg0: i32) -> (i32, i32) {
    %c0_i32 = arith.constant 0 : i32
    %c0_i32_0 = arith.constant 0 : i32
    %c0_i32_1 = arith.constant 0 : i32
    return %c0_i32, %c0_i32_0 : i32, i32
  }
  func.func @transform_4(%arg0: i32) -> (i32, i32) {
    %c0_i32 = arith.constant 0 : i32
    %c0_i32_0 = arith.constant 0 : i32
    %c0_i32_1 = arith.constant 0 : i32
    return %c0_i32, %c0_i32_0 : i32, i32
  }
  func.func @transform_5(%arg0: i32) -> (i32, i32) {
    %c0_i32 = arith.constant 0 : i32
    %c0_i32_0 = arith.constant 0 : i32
    %c0_i32_1 = arith.constant 0 : i32
    return %c0_i32, %c0_i32_0 : i32, i32
  }
  func.func @transform_6(%arg0: i32) -> (i32, i32) {
    %c0_i32 = arith.constant 0 : i32
    %c0_i32_0 = arith.constant 0 : i32
    %c0_i32_1 = arith.constant 0 : i32
    return %c0_i32, %c0_i32_0 : i32, i32
  }
  func.func @transform_7(%arg0: i32) -> (i32, i32) {
    %c0_i32 = arith.constant 0 : i32
    %c0_i32_0 = arith.constant 0 : i32
    %c0_i32_1 = arith.constant 0 : i32
    return %c0_i32, %c0_i32_0 : i32, i32
  }
  func.func @transform_8(%arg0: i32) -> (i32, i32) {
    %c0_i32 = arith.constant 0 : i32
    %c0_i32_0 = arith.constant 0 : i32
    %c0_i32_1 = arith.constant 0 : i32
    return %c0_i32, %c0_i32_0 : i32, i32
  }
  func.func @transform_9(%arg0: i32) -> (i32, i32) {
    %c0_i32 = arith.constant 0 : i32
    %c0_i32_0 = arith.constant 0 : i32
    return %arg0, %c0_i32 : i32, i32
  }
}

</mosaic_0001>

<llo_original>
// kernel: critic_forward.1
$region0: #{critic_forward.1}
  #allocation0 [shape = 'u32[]', space=smem, size = 0x4, offset = 0x4, fixed_abs, tag = 'smem constant byte address 0x4 - core index']
  #allocation1 [shape = 'u32[144,128]{1,0:T(1,128)}', space=vmem, size = 0x12000, scoped, tag = 'internal scratch']
  #allocation2 [shape = 'f32[1,1]{1,0:T(1,128)S(1)}', space=vmem, size = 0x200, scoped, tag = 'scoped memory for critic_forward.1']
  %s0 = inlined_call_operand.vmem [shape: f32[8,4], index: 0, kind: input, shape index: {}]
  %s1 = inlined_call_operand.vmem [shape: f32[4,32], index: 1, kind: input, shape index: {}]
  %s2 = inlined_call_operand.vmem [shape: f32[1,32], index: 2, kind: input, shape index: {}]
  %s3 = inlined_call_operand.hbm [shape: f32[32,32], index: 3, kind: input, shape index: {}]
  %s4 = inlined_call_operand.vmem [shape: f32[1,32], index: 4, kind: input, shape index: {}]
  %s5 = inlined_call_operand.hbm [shape: f32[32,32], index: 5, kind: input, shape index: {}]
  %s6 = inlined_call_operand.vmem [shape: f32[1,32], index: 6, kind: input, shape index: {}]
  %s7 = inlined_call_operand.vmem [shape: f32[1,32], index: 7, kind: input, shape index: {}]
  %s8 = inlined_call_operand.<no memory space> [shape: f32[1,1], index: 8, kind: input, shape index: {}]
  %s9 = inlined_call_operand.vmem [shape: f32[8,1], index: 9, kind: output, shape index: {}]
  %s10 = sld [smem:[#allocation0]]
  $region54: #{critic_forward.1} parent=0
    _
  %s12 = ssub.s32 1, %s10
  %s13 = scalar_select 0, %s12, %s10
  %v14 = vstv %s8
  %15 = vst [vmem:[#allocation2] sm:$0x1] %v14
  $region1: #{critic_forward.1} parent=0
    #allocation3 [shape = 'u8[16384]{0}', space=vmem, size = 0x4000, scoped, tag = 'input window, operand 3, single buffered']
    #allocation4 [shape = 's32[1]{0}', space=sflag, size = 0x4, scoped, tag = 'scoped memory for critic_forward.1']
    #allocation5 [shape = 'u8[16384]{0}', space=vmem, size = 0x4000, scoped, tag = 'input window, operand 5, single buffered']
    #allocation6 [shape = 's32[1]{0}', space=sflag, size = 0x4, scoped, tag = 'scoped memory for critic_forward.1']
    %16 = vsyncpa [#allocation4], 0
    %17 = vsyncpa [#allocation6], 0
    // Predicated region
    $region2: #{critic_forward.1} parent=1 // pred_check
      _
    $region3: #{critic_forward.1} parent=1 // pred_check_branch
      %19 = sbr.rel (0) target = $region5
    $region4: #{critic_forward.1} parent=1 // pred_region
      _
    $region5: #{critic_forward.1} parent=1 // pred_fallthru
      _
    // Predicated region
    $region6: #{critic_forward.1} parent=1 // pred_check
      _
    $region7: #{critic_forward.1} parent=1 // pred_check_branch
      %21 = sbr.rel (0) target = $region9
    $region8: #{critic_forward.1} parent=1 // pred_region
      _
    $region9: #{critic_forward.1} parent=1 // pred_fallthru
      _
    // Predicated region
    $region10: #{critic_forward.1} parent=1 // pred_check
      _
    $region11: #{critic_forward.1} parent=1 // pred_check_branch
      %23 = sbr.rel (0) target = $region13
    $region12: #{critic_forward.1} parent=1 // pred_region
      _
    $region13: #{critic_forward.1} parent=1 // pred_fallthru
      _
    // Predicated region
    $region14: #{critic_forward.1} parent=1 // pred_check
      _
    $region15: #{critic_forward.1} parent=1 // pred_check_branch
      %25 = sbr.rel (0) target = $region17
    $region16: #{critic_forward.1} parent=1 // pred_region
      %s27 = ssub.s32 512, 512
      %28 = vsyncadd [#allocation4], %s27
      %s29 = sshll.u32 [#allocation3], 4
      %s30 = int_to_ptr.vmem [resolvable:$true] %s29
      %35 = dma.hbm_to_vmem [thread:$0]  %s3, 512, %s30, [#allocation4], 128, 128, 8
    $region17: #{critic_forward.1} parent=1 // pred_fallthru
      _
    // Predicated region
    $region18: #{critic_forward.1} parent=1 // pred_check
      _
    $region19: #{critic_forward.1} parent=1 // pred_check_branch
      %37 = sbr.rel (0) target = $region21
    $region20: #{critic_forward.1} parent=1 // pred_region
      _
    $region21: #{critic_forward.1} parent=1 // pred_fallthru
      _
    // Predicated region
    $region22: #{critic_forward.1} parent=1 // pred_check
      _
    $region23: #{critic_forward.1} parent=1 // pred_check_branch
      %39 = sbr.rel (0) target = $region25
    $region24: #{critic_forward.1} parent=1 // pred_region
      %s41 = ssub.s32 512, 512
      %42 = vsyncadd [#allocation6], %s41
      %s43 = sshll.u32 [#allocation5], 4
      %s44 = int_to_ptr.vmem [resolvable:$true] %s43
      %49 = dma.hbm_to_vmem [thread:$0]  %s5, 512, %s44, [#allocation6], 128, 128, 8
    $region25: #{critic_forward.1} parent=1 // pred_fallthru
      _
    // Predicated region
    $region26: #{critic_forward.1} parent=1 // pred_check
      _
    $region27: #{critic_forward.1} parent=1 // pred_check_branch
      %51 = sbr.rel (0) target = $region29
    $region28: #{critic_forward.1} parent=1 // pred_region
      _
    $region29: #{critic_forward.1} parent=1 // pred_fallthru
      _
    // Predicated region
    $region30: #{critic_forward.1} parent=1 // pred_check
      _
    $region31: #{critic_forward.1} parent=1 // pred_check_branch
      %53 = sbr.rel (0) target = $region33
    $region32: #{critic_forward.1} parent=1 // pred_region
      _
    $region33: #{critic_forward.1} parent=1 // pred_fallthru
      _
    // Predicated region
    $region34: #{critic_forward.1} parent=1 // pred_check
      _
    $region35: #{critic_forward.1} parent=1 // pred_check_branch
      %55 = sbr.rel (0) target = $region37
    $region36: #{critic_forward.1} parent=1 // pred_region
      _
    $region37: #{critic_forward.1} parent=1 // pred_fallthru
      _
    // Predicated region
    $region38: #{critic_forward.1} parent=1 // pred_check
      _
    $region39: #{critic_forward.1} parent=1 // pred_check_branch
      %57 = sbr.rel (0) target = $region41
    $region40: #{critic_forward.1} parent=1 // pred_region
      %58 = dma.done [#allocation4], 512
    $region41: #{critic_forward.1} parent=1 // pred_fallthru
      _
    // Predicated region
    $region42: #{critic_forward.1} parent=1 // pred_check
      _
    $region43: #{critic_forward.1} parent=1 // pred_check_branch
      %60 = sbr.rel (0) target = $region45
    $region44: #{critic_forward.1} parent=1 // pred_region
      %61 = dma.done [#allocation6], 512
    $region45: #{critic_forward.1} parent=1 // pred_fallthru
      _
    %v62 = vld [vmem:[%s0] sm:$0xff]
    %v63 = vld [vmem:[%s2] sm:$0x1]
    %v65 = vlaneseq
    %v66 = vshrl.u32 %v65, 7
    %v67 = vsub.s32 0, %v66
    %v68 = vrot.slane %v63, %v67
    %v70 = vld [vmem:[%s1] sm:$0x1]
    %72 = vset.pattern.permute.xlu0 0
    %73 = vperm.xlu0 %72, %v62
    %v74 = vpop.permute.xlu0 %73
    %v76 = vlaneseq
    %v77 = vshrl.u32 %v76, 7
    %v78 = vsub.s32 0, %v77
    %v79 = vrot.slane %v70, %v78
    %v80 = vmul.f32 %v74, %v79
    %v81 = vadd.f32 %v68, %v80
    %v82 = vld [vmem:[%s1 + $0x1] sm:$0x1]
    %83 = vset.pattern.permute.xlu0 1
    %84 = vperm.xlu0 %83, %v62
    %v85 = vpop.permute.xlu0 %84
    %v87 = vlaneseq
    %v88 = vshrl.u32 %v87, 7
    %v89 = vsub.s32 0, %v88
    %v90 = vrot.slane %v82, %v89
    %v91 = vmul.f32 %v85, %v90
    %v92 = vadd.f32 %v81, %v91
    %v93 = vld [vmem:[%s1 + $0x2] sm:$0x1]
    %94 = vset.pattern.permute.xlu0 2
    %95 = vperm.xlu0 %94, %v62
    %v96 = vpop.permute.xlu0 %95
    %v98 = vlaneseq
    %v99 = vshrl.u32 %v98, 7
    %v100 = vsub.s32 0, %v99
    %v101 = vrot.slane %v93, %v100
    %v102 = vmul.f32 %v96, %v101
    %v103 = vadd.f32 %v92, %v102
    %v104 = vld [vmem:[%s1 + $0x3] sm:$0x1]
    %105 = vset.pattern.permute.xlu0 3
    %106 = vperm.xlu0 %105, %v62
    %v107 = vpop.permute.xlu0 %106
    %v109 = vlaneseq
    %v110 = vshrl.u32 %v109, 7
    %v111 = vsub.s32 0, %v110
    %v112 = vrot.slane %v104, %v111
    %v113 = vmul.f32 %v107, %v112
    %v114 = vadd.f32 %v103, %v113
    %v115 = vmax.f32 %v114, 0.0
    %v116 = vld [vmem:[#allocation3] sm:$0xff]
    %v117 = vld [vmem:[#allocation3 + $0x8] sm:$0xff]
    %v118 = vld [vmem:[#allocation3 + $0x10] sm:$0xff]
    %v119 = vld [vmem:[#allocation3 + $0x18] sm:$0xff]
    %v120 = vld [vmem:[%s4] sm:$0x1]
    %v122 = vlaneseq
    %v123 = vshrl.u32 %v122, 7
    %v124 = vsub.s32 0, %v123
    %v125 = vrot.slane %v120, %v124
    %vm127 = vcmask 261120
    %v129 = vsel %vm127, %v115, 0
    %131 = vmatprep.subr.mxu0 0.0
    %132 = vmatpush1.msra.mxu0 0.0
    %133 = vmatprep.subr.mxu0 0.0
    %134 = vmatpush1.msra.mxu0 0.0
    %135 = vmatprep.subr.mxu0 0.0
    %136 = vmatpush1.msra.mxu0 0.0
    %137 = vmatprep.subr.mxu0 0.0
    %138 = vmatpush1.msra.mxu0 0.0
    %139 = vmatprep.subr.mxu0 0.0
    %140 = vmatpush1.msra.mxu0 0.0
    %141 = vmatprep.subr.mxu0 0.0
    %142 = vmatpush1.msra.mxu0 0.0
    %143 = vmatprep.subr.mxu0 0.0
    %144 = vmatpush1.msra.mxu0 0.0
    %145 = vmatprep.subr.mxu0 0.0
    %146 = vmatpush1.msra.mxu0 0.0
    %147 = vmatprep.subr.mxu0 0.0
    %148 = vmatpush1.msra.mxu0 0.0
    %149 = vmatprep.subr.mxu0 0.0
    %150 = vmatpush1.msra.mxu0 0.0
    %151 = vmatprep.subr.mxu0 0.0
    %152 = vmatpush1.msra.mxu0 0.0
    %153 = vmatprep.subr.mxu0 0.0
    %154 = vmatpush1.msra.mxu0 0.0
    %155 = vmatprep.subr.mxu0 0.0
    %156 = vmatpush1.msra.mxu0 %v119
    %157 = vmatprep.subr.mxu0 0.0
    %158 = vmatpush1.msra.mxu0 %v118
    %159 = vmatprep.subr.mxu0 0.0
    %160 = vmatpush1.msra.mxu0 %v117
    %161 = vmatprep.subr.mxu0 0.0
    %162 = vmatpush1.msra.mxu0 %v116
    %163 = vmatprep.subr.mxu0 0.0
    %164 = vmatpush2.msra.mxu0 0.0
    %165 = vmatprep.subr.mxu0 0.0
    %166 = vmatpush2.msra.mxu0 0.0
    %167 = vmatprep.subr.mxu0 0.0
    %168 = vmatpush2.msra.mxu0 0.0
    %169 = vmatprep.subr.mxu0 0.0
    %170 = vmatpush2.msra.mxu0 0.0
    %171 = vmatprep.subr.mxu0 0.0
    %172 = vmatpush2.msra.mxu0 0.0
    %173 = vmatprep.subr.mxu0 0.0
    %174 = vmatpush2.msra.mxu0 0.0
    %175 = vmatprep.subr.mxu0 0.0
    %176 = vmatpush2.msra.mxu0 0.0
    %177 = vmatprep.subr.mxu0 0.0
    %178 = vmatpush2.msra.mxu0 0.0
    %179 = vmatprep.subr.mxu0 0.0
    %180 = vmatpush2.msra.mxu0 0.0
    %181 = vmatprep.subr.mxu0 0.0
    %182 = vmatpush2.msra.mxu0 0.0
    %183 = vmatprep.subr.mxu0 0.0
    %184 = vmatpush2.msra.mxu0 0.0
    %185 = vmatprep.subr.mxu0 0.0
    %186 = vmatpush2.msra.mxu0 0.0
    %187 = vmatprep.subr.mxu0 0.0
    %188 = vmatpush2.msra.mxu0 0.0
    %189 = vmatprep.subr.mxu0 0.0
    %190 = vmatpush2.msra.mxu0 0.0
    %191 = vmatprep.subr.mxu0 0.0
    %192 = vmatpush2.msra.mxu0 0.0
    %193 = vmatprep.subr.mxu0 0.0
    %194 = vmatpush2.msra.mxu0 0.0
    %195 = vmatprep.mubr.f32.mxu0 0.0
    %196 = vmatmul.mubr.f32.gmra.mxu0 %v129
    %v197 = vpop.f32.mrf.mxu0
    %v198 = vadd.f32 %v125, %v197
    %v199 = vpop.f32.mrf.mxu0
    %200 = vdwg.mxu0
    %v201 = vmax.f32 %v198, 0.0
    %v202 = vld [vmem:[#allocation5] sm:$0xff]
    %v203 = vld [vmem:[#allocation5 + $0x8] sm:$0xff]
    %v204 = vld [vmem:[#allocation5 + $0x10] sm:$0xff]
    %v205 = vld [vmem:[#allocation5 + $0x18] sm:$0xff]
    %v206 = vld [vmem:[%s6] sm:$0x1]
    %v208 = vlaneseq
    %v209 = vshrl.u32 %v208, 7
    %v210 = vsub.s32 0, %v209
    %v211 = vrot.slane %v206, %v210
    %v214 = vsel %vm127, %v201, 0
    %216 = vmatprep.subr.mxu0 0.0
    %217 = vmatpush1.msra.mxu0 0.0
    %218 = vmatprep.subr.mxu0 0.0
    %219 = vmatpush1.msra.mxu0 0.0
    %220 = vmatprep.subr.mxu0 0.0
    %221 = vmatpush1.msra.mxu0 0.0
    %222 = vmatprep.subr.mxu0 0.0
    %223 = vmatpush1.msra.mxu0 0.0
    %224 = vmatprep.subr.mxu0 0.0
    %225 = vmatpush1.msra.mxu0 0.0
    %226 = vmatprep.subr.mxu0 0.0
    %227 = vmatpush1.msra.mxu0 0.0
    %228 = vmatprep.subr.mxu0 0.0
    %229 = vmatpush1.msra.mxu0 0.0
    %230 = vmatprep.subr.mxu0 0.0
    %231 = vmatpush1.msra.mxu0 0.0
    %232 = vmatprep.subr.mxu0 0.0
    %233 = vmatpush1.msra.mxu0 0.0
    %234 = vmatprep.subr.mxu0 0.0
    %235 = vmatpush1.msra.mxu0 0.0
    %236 = vmatprep.subr.mxu0 0.0
    %237 = vmatpush1.msra.mxu0 0.0
    %238 = vmatprep.subr.mxu0 0.0
    %239 = vmatpush1.msra.mxu0 0.0
    %240 = vmatprep.subr.mxu0 0.0
    %241 = vmatpush1.msra.mxu0 %v205
    %242 = vmatprep.subr.mxu0 0.0
    %243 = vmatpush1.msra.mxu0 %v204
    %244 = vmatprep.subr.mxu0 0.0
    %245 = vmatpush1.msra.mxu0 %v203
    %246 = vmatprep.subr.mxu0 0.0
    %247 = vmatpush1.msra.mxu0 %v202
    %248 = vmatprep.subr.mxu0 0.0
    %249 = vmatpush2.msra.mxu0 0.0
    %250 = vmatprep.subr.mxu0 0.0
    %251 = vmatpush2.msra.mxu0 0.0
    %252 = vmatprep.subr.mxu0 0.0
    %253 = vmatpush2.msra.mxu0 0.0
    %254 = vmatprep.subr.mxu0 0.0
    %255 = vmatpush2.msra.mxu0 0.0
    %256 = vmatprep.subr.mxu0 0.0
    %257 = vmatpush2.msra.mxu0 0.0
    %258 = vmatprep.subr.mxu0 0.0
    %259 = vmatpush2.msra.mxu0 0.0
    %260 = vmatprep.subr.mxu0 0.0
    %261 = vmatpush2.msra.mxu0 0.0
    %262 = vmatprep.subr.mxu0 0.0
    %263 = vmatpush2.msra.mxu0 0.0
    %264 = vmatprep.subr.mxu0 0.0
    %265 = vmatpush2.msra.mxu0 0.0
    %266 = vmatprep.subr.mxu0 0.0
    %267 = vmatpush2.msra.mxu0 0.0
    %268 = vmatprep.subr.mxu0 0.0
    %269 = vmatpush2.msra.mxu0 0.0
    %270 = vmatprep.subr.mxu0 0.0
    %271 = vmatpush2.msra.mxu0 0.0
    %272 = vmatprep.subr.mxu0 0.0
    %273 = vmatpush2.msra.mxu0 0.0
    %274 = vmatprep.subr.mxu0 0.0
    %275 = vmatpush2.msra.mxu0 0.0
    %276 = vmatprep.subr.mxu0 0.0
    %277 = vmatpush2.msra.mxu0 0.0
    %278 = vmatprep.subr.mxu0 0.0
    %279 = vmatpush2.msra.mxu0 0.0
    %280 = vmatprep.mubr.f32.mxu0 0.0
    %281 = vmatmul.mubr.f32.gmra.mxu0 %v214
    %v282 = vpop.f32.mrf.mxu0
    %v283 = vadd.f32 %v211, %v282
    %v284 = vpop.f32.mrf.mxu0
    %285 = vdwg.mxu0
    %v286 = vmax.f32 %v283, 0.0
    %v287 = vld [vmem:[%s7] sm:$0x1]
    %v289 = vlaneseq
    %v290 = vshrl.u32 %v289, 7
    %v291 = vsub.s32 0, %v290
    %v292 = vrot.slane %v287, %v291
    %v294 = vmul.f32 %v286, %v292
    %v295 = vsel %vm127, %v294, 0.0
    %296 = vadd.xlane.f32.xlu0 %v295
    %v297 = vpop.xlane.xlu0 %296
    %v298 = vld [vmem:[#allocation2] sm:$0x1]
    %v300 = vlaneseq
    %v301 = vshrl.u32 %v300, 7
    %v302 = vsub.s32 0, %v301
    %v303 = vrot.slane %v298, %v302
    %v305 = vadd.f32 %v297, %v303
    %vm306 = vcmask 7168
    %307 = vst.msk [vmem:[%s9] sm:$0xff] %vm306, %v305
    // Predicated region
    $region46: #{critic_forward.1} parent=1 // pred_check
      _
    $region47: #{critic_forward.1} parent=1 // pred_check_branch
      %309 = sbr.rel (0) target = $region49
    $region48: #{critic_forward.1} parent=1 // pred_region
      _
    $region49: #{critic_forward.1} parent=1 // pred_fallthru
      _
    // Predicated region
    $region50: #{critic_forward.1} parent=1 // pred_check
      _
    $region51: #{critic_forward.1} parent=1 // pred_check_branch
      %311 = sbr.rel (0) target = $region53
    $region52: #{critic_forward.1} parent=1 // pred_region
      _
    $region53: #{critic_forward.1} parent=1 // pred_fallthru
      _
    %312 = vsyncpa [#allocation4], 1
    %313 = vsyncpa [#allocation6], 1

</llo_original>
